<compile_context>
chip_gen: v5e
topology: v5e:2x2
jax: 0.10.0
libtpu: 0.0.40
codegen_flags: <defaults>
</compile_context>

<pallas_src>
import math

import jax
import jax.numpy as jnp
from jax.experimental import pallas as pl
from jax.experimental.pallas import tpu as pltpu


def _fuse_graph_kernel(graph_ref, wf_ref, w_ref, a_ref):
    # Batch-invariant work, done exactly once: A = (sum_g graph_g * wf_g) @ W.
    g_fused = jnp.sum(graph_ref[...] * wf_ref[...], axis=0)          # (N, N), VPU
    a_ref[...] = jnp.dot(
        g_fused, w_ref[...], preferred_element_type=jnp.float32
    ).astype(a_ref.dtype)


def _graph_matmul_kernel(a_ref, x_ref, b_ref, o_ref):
    # One lane-dense MXU matmul per (row-tile, lane-tile): o = A_tile @ X_tile + bias.
    y = jnp.dot(a_ref[...], x_ref[...], preferred_element_type=jnp.float32)
    o_ref[...] = (y + b_ref[...]).astype(o_ref.dtype)


def _pick_tile(dim, candidates):
    for c in candidates:
        if dim % c == 0:
            return c
    return dim


def multi_graph_conv(x, graph, weight_fusion, weight, bias):
    """x: (B, N, C), graph/weight_fusion: (G, N, N), weight: (N, N), bias: (C,)."""
    batch, nodes, channels = x.shape
    num_graphs = graph.shape[0]
    bc = batch * channels

    # ---- Stage 1: fused graph matrix, hoisted out of the batch loop. ----
    a = pl.pallas_call(
        _fuse_graph_kernel,
        out_shape=jax.ShapeDtypeStruct((nodes, nodes), jnp.float32),
        grid_spec=pltpu.PrefetchScalarGridSpec(
            num_scalar_prefetch=0,
            grid=(1,),
            in_specs=[
                pl.BlockSpec((num_graphs, nodes, nodes), lambda i: (0, 0, 0)),
                pl.BlockSpec((num_graphs, nodes, nodes), lambda i: (0, 0, 0)),
                pl.BlockSpec((nodes, nodes), lambda i: (0, 0)),
            ],
            out_specs=pl.BlockSpec((nodes, nodes), lambda i: (0, 0)),
        ),
        compiler_params=pltpu.CompilerParams(dimension_semantics=("arbitrary",)),
    )(graph, weight_fusion, weight)
    # TODO(synk): tile stage 1 over row blocks of (N, N) if nodes grows large
    # enough that the (G, N, N) stack no longer fits VMEM (v7x: 64 MiB).

    # ---- Stage 2: collapse the batch into one lane-dense matmul A @ X + bias. ----
    # x (B, N, C) -> X (N, B*C); result (N, B*C) -> (B, N, C) afterwards.
    x_wide = jnp.transpose(x, (1, 0, 2)).reshape(nodes, bc)
    bias_wide = jnp.broadcast_to(bias, (batch, channels)).reshape(1, bc)

    tm = _pick_tile(nodes, (256, 128))        # row tile of A / output
    tn = _pick_tile(bc, (512, 256, 128))      # lane tile of X / output

    out_wide = pl.pallas_call(
        _graph_matmul_kernel,
        out_shape=jax.ShapeDtypeStruct((nodes, bc), x.dtype),
        grid_spec=pltpu.PrefetchScalarGridSpec(
            num_scalar_prefetch=0,
            grid=(nodes // tm, bc // tn),
            in_specs=[
                pl.BlockSpec((tm, nodes), lambda i, j: (i, 0)),
                pl.BlockSpec((nodes, tn), lambda i, j: (0, j)),
                pl.BlockSpec((1, tn), lambda i, j: (0, j)),
            ],
            out_specs=pl.BlockSpec((tm, tn), lambda i, j: (i, j)),
        ),
        compiler_params=pltpu.CompilerParams(
            dimension_semantics=("parallel", "parallel")
        ),
    )(a, x_wide, bias_wide)

    return out_wide.reshape(nodes, batch, channels).transpose(1, 0, 2)


def _glorot_uniform(key, shape):
    # PyG-style glorot: bound = sqrt(6 / (size(-2) + size(-1)))
    bound = math.sqrt(6.0 / (shape[-2] + shape[-1]))
    return jax.random.uniform(key, shape, jnp.float32, -bound, bound)


if __name__ == "__main__":
    # Small shapes consistent with the module; channels picked so the collapsed
    # (N, B*C) output is lane-dense (B*C = 128).
    batch, nodes, channels, num_graphs = 2, 16, 64, 3

    key = jax.random.PRNGKey(0)
    k_wf, k_w, k_b, k_x, k_g = jax.random.split(key, 5)

    weight_fusion = _glorot_uniform(k_wf, (num_graphs, nodes, nodes))
    weight = _glorot_uniform(k_w, (nodes, nodes))
    bias = 0.1 * jax.random.normal(k_b, (channels,), jnp.float32)

    x = jax.random.normal(k_x, (batch, nodes, channels), jnp.float32)
    graph = jax.random.normal(k_g, (num_graphs, nodes, nodes), jnp.float32)

    out = multi_graph_conv(x, graph, weight_fusion, weight, bias)
    out = jax.block_until_ready(out)

    # Pure-JAX reference check (same math as the PyTorch forward).
    g_fused = jnp.sum(graph * weight_fusion, axis=0)
    ref = jnp.einsum("nm,bmc->bnc", g_fused @ weight, x) + bias[None, None, :]
    assert out.shape == (batch, nodes, channels)
    assert jnp.allclose(out, ref, atol=1e-4, rtol=1e-4)

    print("KERNEL_OK")
</pallas_src>

<mosaic_0001>
module attributes {stable_mosaic.version = 11 : i64} {
  func.func @_fuse_graph_kernel(%arg0: i32, %arg1: memref<3x16x16xf32, #tpu.memory_space<vmem>>, %arg2: memref<3x16x16xf32, #tpu.memory_space<vmem>>, %arg3: memref<16x16xf32, #tpu.memory_space<vmem>>, %arg4: memref<16x16xf32, #tpu.memory_space<vmem>>) attributes {dimension_semantics = [#tpu.dimension_semantics<arbitrary>], iteration_bounds = array<i64: 1>, scalar_prefetch = 0 : i64, scratch_operands = 0 : i64, tpu.core_type = #tpu.core_type<tc>, window_params = [{pipeline_mode = #tpu.pipeline_mode<synchronous>, transform_indices = @transform_0, window_bounds = array<i64: 3, 16, 16>}, {pipeline_mode = #tpu.pipeline_mode<synchronous>, transform_indices = @transform_1, window_bounds = array<i64: 3, 16, 16>}, {pipeline_mode = #tpu.pipeline_mode<synchronous>, transform_indices = @transform_2, window_bounds = array<i64: 16, 16>}, {pipeline_mode = #tpu.pipeline_mode<synchronous>, transform_indices = @transform_3, window_bounds = array<i64: 16, 16>}]} {
    %c0 = arith.constant 0 : index
    %c0_0 = arith.constant 0 : index
    %c0_1 = arith.constant 0 : index
    %0 = vector.load %arg1[%c0, %c0_0, %c0_1] : memref<3x16x16xf32, #tpu.memory_space<vmem>>, vector<3x16x16xf32>
    %c0_2 = arith.constant 0 : index
    %c0_3 = arith.constant 0 : index
    %c0_4 = arith.constant 0 : index
    %1 = vector.load %arg2[%c0_2, %c0_3, %c0_4] : memref<3x16x16xf32, #tpu.memory_space<vmem>>, vector<3x16x16xf32>
    %2 = arith.mulf %0, %1 : vector<3x16x16xf32>
    %cst = arith.constant dense<0.000000e+00> : vector<16x16xf32>
    %3 = vector.multi_reduction <add>, %2, %cst [0] : vector<3x16x16xf32> to vector<16x16xf32>
    %c0_5 = arith.constant 0 : index
    %c0_6 = arith.constant 0 : index
    %4 = vector.load %arg3[%c0_5, %c0_6] : memref<16x16xf32, #tpu.memory_space<vmem>>, vector<16x16xf32>
    %cst_7 = arith.constant dense<0.000000e+00> : vector<16x16xf32>
    %5 = tpu.matmul %3, %4, %cst_7 {dimension_numbers = #tpu.dot_dimension_numbers<[1], [0], [0], [1], [0, 0, 1, 1], [], []>} : vector<16x16xf32>, vector<16x16xf32>, vector<16x16xf32> -> vector<16x16xf32>
    %c0_8 = arith.constant 0 : index
    %c0_9 = arith.constant 0 : index
    %6 = vector.load %arg4[%c0_8, %c0_9] : memref<16x16xf32, #tpu.memory_space<vmem>>, vector<16x16xf32>
    tpu.vector_store %arg4[%c0_8, %c0_9], %5 {strides = array<i32>} : memref<16x16xf32, #tpu.memory_space<vmem>>, vector<16x16xf32>,
    return
  }
  func.func @transform_0(%arg0: i32) -> (i32, i32, i32) {
    %c0_i32 = arith.constant 0 : i32
    %c0_i32_0 = arith.constant 0 : i32
    %c0_i32_1 = arith.constant 0 : i32
    %c0_i32_2 = arith.constant 0 : i32
    return %c0_i32, %c0_i32_0, %c0_i32_1 : i32, i32, i32
  }
  func.func @transform_1(%arg0: i32) -> (i32, i32, i32) {
    %c0_i32 = arith.constant 0 : i32
    %c0_i32_0 = arith.constant 0 : i32
    %c0_i32_1 = arith.constant 0 : i32
    %c0_i32_2 = arith.constant 0 : i32
    return %c0_i32, %c0_i32_0, %c0_i32_1 : i32, i32, i32
  }
  func.func @transform_2(%arg0: i32) -> (i32, i32) {
    %c0_i32 = arith.constant 0 : i32
    %c0_i32_0 = arith.constant 0 : i32
    %c0_i32_1 = arith.constant 0 : i32
    return %c0_i32, %c0_i32_0 : i32, i32
  }
  func.func @transform_3(%arg0: i32) -> (i32, i32) {
    %c0_i32 = arith.constant 0 : i32
    %c0_i32_0 = arith.constant 0 : i32
    %c0_i32_1 = arith.constant 0 : i32
    return %c0_i32, %c0_i32_0 : i32, i32
  }
}

</mosaic_0001>

<llo_original>
// kernel: tpu_custom_call.1
$region0: #{tpu_custom_call.1}
  #allocation0 [shape = 'u32[]', space=smem, size = 0x4, offset = 0x4, fixed_abs, tag = 'smem constant byte address 0x4 - core index']
  #allocation1 [shape = 'u32[72,128]{1,0:T(1,128)}', space=vmem, size = 0x9000, scoped, tag = 'internal scratch']
  %s0 = inlined_call_operand.hbm [shape: f32[3,16,16], index: 0, kind: input, shape index: {}]
  %s1 = inlined_call_operand.hbm [shape: f32[3,16,16], index: 1, kind: input, shape index: {}]
  %s2 = inlined_call_operand.hbm [shape: f32[16,16], index: 2, kind: input, shape index: {}]
  %s3 = inlined_call_operand.hbm [shape: f32[16,16], index: 3, kind: output, shape index: {}]
  %s4 = sld [smem:[#allocation0]]
  $region34: #{tpu_custom_call.1} parent=0
    _
  %s6 = ssub.s32 1, %s4
  %s7 = scalar_select 0, %s6, %s4
  $region1: #{tpu_custom_call.1} parent=0
    #allocation2 [shape = 'u8[24576]{0}', space=vmem, size = 0x6000, scoped, tag = 'input window, operand 0, single buffered']
    #allocation3 [shape = 's32[1]{0}', space=sflag, size = 0x4, scoped, tag = 'scoped memory for tpu_custom_call.1']
    #allocation4 [shape = 's32[1]{0}', space=sflag, size = 0x4, scoped, tag = 'scoped memory for tpu_custom_call.1']
    #allocation5 [shape = 'u8[24576]{0}', space=vmem, size = 0x6000, scoped, tag = 'input window, operand 1, single buffered']
    #allocation6 [shape = 's32[1]{0}', space=sflag, size = 0x4, scoped, tag = 'scoped memory for tpu_custom_call.1']
    #allocation7 [shape = 'u8[8192]{0}', space=vmem, size = 0x2000, scoped, tag = 'input window, operand 2, single buffered']
    #allocation8 [shape = 'u8[8192]{0}', space=vmem, size = 0x2000, scoped, tag = 'output window, operand 0, single buffered']
    %8 = vsyncpa [#allocation3], 0
    %9 = vsyncpa [#allocation6], 0
    %10 = vsyncpa [#allocation4], 0
    // Predicated region
    $region2: #{tpu_custom_call.1} parent=1 // pred_check
      _
    $region3: #{tpu_custom_call.1} parent=1 // pred_check_branch
      %12 = sbr.rel (0) target = $region5
    $region4: #{tpu_custom_call.1} parent=1 // pred_region
      %14 = vsyncadd [#allocation3], 0
      %s15 = sshll.u32 %s0, 4
      %s16 = int_to_ptr.hbm [resolvable:$true] %s15
      %s17 = sshll.u32 [#allocation2], 4
      %s18 = int_to_ptr.vmem [resolvable:$true] %s17
      %23 = dma.hbm_to_vmem [thread:$0]  %s16, 768, %s18, [#allocation3], 128, 128, 8
    $region5: #{tpu_custom_call.1} parent=1 // pred_fallthru
      _
    // Predicated region
    $region6: #{tpu_custom_call.1} parent=1 // pred_check
      _
    $region7: #{tpu_custom_call.1} parent=1 // pred_check_branch
      %25 = sbr.rel (0) target = $region9
    $region8: #{tpu_custom_call.1} parent=1 // pred_region
      %27 = vsyncadd [#allocation6], 0
      %s28 = sshll.u32 %s1, 4
      %s29 = int_to_ptr.hbm [resolvable:$true] %s28
      %s30 = sshll.u32 [#allocation5], 4
      %s31 = int_to_ptr.vmem [resolvable:$true] %s30
      %36 = dma.hbm_to_vmem [thread:$0]  %s29, 768, %s31, [#allocation6], 128, 128, 8
    $region9: #{tpu_custom_call.1} parent=1 // pred_fallthru
      _
    // Predicated region
    $region10: #{tpu_custom_call.1} parent=1 // pred_check
      _
    $region11: #{tpu_custom_call.1} parent=1 // pred_check_branch
      %38 = sbr.rel (0) target = $region13
    $region12: #{tpu_custom_call.1} parent=1 // pred_region
      %40 = vsyncadd [#allocation6], 0
      %s41 = sshll.u32 %s2, 4
      %s42 = int_to_ptr.hbm [resolvable:$true] %s41
      %s43 = sshll.u32 [#allocation7], 4
      %s44 = int_to_ptr.vmem [resolvable:$true] %s43
      %49 = dma.hbm_to_vmem [thread:$0]  %s42, 256, %s44, [#allocation6], 128, 128, 8
    $region13: #{tpu_custom_call.1} parent=1 // pred_fallthru
      _
    // Predicated region
    $region14: #{tpu_custom_call.1} parent=1 // pred_check
      _
    $region15: #{tpu_custom_call.1} parent=1 // pred_check_branch
      %51 = sbr.rel (0) target = $region17
    $region16: #{tpu_custom_call.1} parent=1 // pred_region
      %53 = dma.done [#allocation3], 768
    $region17: #{tpu_custom_call.1} parent=1 // pred_fallthru
      _
    // Predicated region
    $region18: #{tpu_custom_call.1} parent=1 // pred_check
      _
    $region19: #{tpu_custom_call.1} parent=1 // pred_check_branch
      %55 = sbr.rel (0) target = $region21
    $region20: #{tpu_custom_call.1} parent=1 // pred_region
      %57 = dma.done [#allocation6], 768
    $region21: #{tpu_custom_call.1} parent=1 // pred_fallthru
      _
    // Predicated region
    $region22: #{tpu_custom_call.1} parent=1 // pred_check
      _
    $region23: #{tpu_custom_call.1} parent=1 // pred_check_branch
      %59 = sbr.rel (0) target = $region25
    $region24: #{tpu_custom_call.1} parent=1 // pred_region
      %61 = dma.done [#allocation6], 256
    $region25: #{tpu_custom_call.1} parent=1 // pred_fallthru
      _
    %v62 = vld [vmem:[#allocation2] sm:$0xff]
    %v63 = vld [vmem:[#allocation2 + $0x8] sm:$0xff]
    %v64 = vld [vmem:[#allocation2 + $0x10] sm:$0xff]
    %v65 = vld [vmem:[#allocation2 + $0x18] sm:$0xff]
    %v66 = vld [vmem:[#allocation2 + $0x20] sm:$0xff]
    %v67 = vld [vmem:[#allocation2 + $0x28] sm:$0xff]
    %v68 = vld [vmem:[#allocation5] sm:$0xff]
    %v69 = vld [vmem:[#allocation5 + $0x8] sm:$0xff]
    %v70 = vld [vmem:[#allocation5 + $0x10] sm:$0xff]
    %v71 = vld [vmem:[#allocation5 + $0x18] sm:$0xff]
    %v72 = vld [vmem:[#allocation5 + $0x20] sm:$0xff]
    %v73 = vld [vmem:[#allocation5 + $0x28] sm:$0xff]
    %v74 = vmul.f32 %v62, %v68
    %v75 = vmul.f32 %v63, %v69
    %v76 = vmul.f32 %v64, %v70
    %v77 = vmul.f32 %v65, %v71
    %v78 = vmul.f32 %v66, %v72
    %v79 = vmul.f32 %v67, %v73
    %vm80 = vcmask 130048
    %v81 = vsel %vm80, %v74, 0.0
    %v82 = vsel %vm80, %v76, 0.0
    %v83 = vadd.f32 %v81, %v82
    %v84 = vsel %vm80, %v78, 0.0
    %v85 = vadd.f32 %v83, %v84
    %v86 = vsel %vm80, %v75, 0.0
    %v87 = vsel %vm80, %v77, 0.0
    %v88 = vadd.f32 %v86, %v87
    %v89 = vsel %vm80, %v79, 0.0
    %v90 = vadd.f32 %v88, %v89
    %v91 = vld [vmem:[#allocation7] sm:$0xff]
    %v92 = vld [vmem:[#allocation7 + $0x8] sm:$0xff]
    %v94 = vsel %vm80, %v85, 0
    %v97 = vsel %vm80, %v90, 0
    %99 = vmatpush.msra.mxu0 0.0
    %100 = vmatpush.msra.mxu0 0.0
    %101 = vmatpush.msra.mxu0 0.0
    %102 = vmatpush.msra.mxu0 0.0
    %103 = vmatpush.msra.mxu0 0.0
    %104 = vmatpush.msra.mxu0 0.0
    %105 = vmatpush.msra.mxu0 0.0
    %106 = vmatpush.msra.mxu0 0.0
    %107 = vmatpush.msra.mxu0 0.0
    %108 = vmatpush.msra.mxu0 0.0
    %109 = vmatpush.msra.mxu0 0.0
    %110 = vmatpush.msra.mxu0 0.0
    %111 = vmatpush.msra.mxu0 0.0
    %112 = vmatpush.msra.mxu0 0.0
    %113 = vmatpush.msra.mxu0 %v92
    %114 = vmatpush.msra.mxu0 %v91
    %115 = vmatmul.f32.gmra.mxu0 %v94
    %v116 = vpop.f32.mrf.mxu0
    %v117 = vadd.f32 0.0, %v116
    %118 = vmatmul.f32.gmra.mxu0 %v97
    %v119 = vpop.f32.mrf.mxu0
    %v120 = vadd.f32 0.0, %v119
    %121 = vdwg.mxu0
    %122 = vst.msk [vmem:[#allocation8] sm:$0xff] %vm80, %v117
    %123 = vst.msk [vmem:[#allocation8 + $0x8] sm:$0xff] %vm80, %v120
    // Predicated region
    $region26: #{tpu_custom_call.1} parent=1 // pred_check
      _
    $region27: #{tpu_custom_call.1} parent=1 // pred_check_branch
      %125 = sbr.rel (0) target = $region29
    $region28: #{tpu_custom_call.1} parent=1 // pred_region
      %127 = vsyncadd [#allocation4], 0
      %s128 = sshll.u32 [#allocation8], 4
      %s129 = int_to_ptr.vmem [resolvable:$true] %s128
      %s130 = sshll.u32 %s3, 4
      %s131 = int_to_ptr.hbm [resolvable:$true] %s130
      %136 = dma.vmem_to_hbm [thread:$0]  %s129, 256, %s131, [#allocation4], 128, 128, 8
    $region29: #{tpu_custom_call.1} parent=1 // pred_fallthru
      _
    // Predicated region
    $region30: #{tpu_custom_call.1} parent=1 // pred_check
      _
    $region31: #{tpu_custom_call.1} parent=1 // pred_check_branch
      %138 = sbr.rel (0) target = $region33
    $region32: #{tpu_custom_call.1} parent=1 // pred_region
      %140 = dma.done [#allocation4], 256
    $region33: #{tpu_custom_call.1} parent=1 // pred_fallthru
      _
    %141 = vsyncpa [#allocation3], 1
    %142 = vsyncpa [#allocation6], 1
    %143 = vsyncpa [#allocation4], 1

</llo_original>
